<compile_context>
chip_gen: v7x
topology: tpu7x:2x2x1
jax: 0.10.0
libtpu: 0.0.40
codegen_flags: <defaults>
</compile_context>

<pallas_src>
import functools

import jax
import jax.numpy as jnp
from jax.experimental import pallas as pl
from jax.experimental.pallas import tpu as pltpu


# ----------------------------------------------------------------------------
# Kernel
# ----------------------------------------------------------------------------
def _conv_gn_kernel(p_ref, w_ref, gb_ref, o_ref, y_ref, *,
                    eps, B, P_pad, P_valid, Cout):
    """One grid step = B samples.

    p_ref:  (KD1, B*P_pad)   im2col patches + ones row (bias), lane-concatenated
    w_ref:  (Cout, KD1)      conv weight with bias appended as last column
    gb_ref: (Cout, 2)        [:,0]=GroupNorm gamma, [:,1]=GroupNorm beta (f32)
    o_ref:  (B, Cout, P_pad) output block
    y_ref:  (Cout, B*P_pad)  f32 VMEM scratch for the matmul result
    """
    # Single MXU call for all B samples in this block (f32 accumulation).
    y_ref[...] = jnp.dot(w_ref[...], p_ref[...],
                         preferred_element_type=jnp.float32)

    gamma = gb_ref[:, 0:1]            # (Cout, 1) f32, hoisted out of the loop
    beta = gb_ref[:, 1:2]             # (Cout, 1) f32
    inv_count = 1.0 / float(Cout * P_valid)

    if P_pad != P_valid:
        # Padded columns are exactly zero (zero patches, zero ones-row), so the
        # sums are unaffected -- but the centered variance needs masking.
        valid = jax.lax.broadcasted_iota(jnp.int32, (Cout, P_pad), 1) < P_valid
    else:
        valid = None

    def normalize_one(i, off):
        y = y_ref[:, pl.ds(off, P_pad)]                      # (Cout, P_pad) f32
        # GroupNorm(num_groups=1): stats over all (C, Ho, Wo) of this sample.
        mean = jnp.sum(y) * inv_count
        d = y - mean
        d2 = d * d if valid is None else jnp.where(valid, d * d, 0.0)
        var = jnp.sum(d2) * inv_count                        # biased, like torch
        inv = jax.lax.rsqrt(var + eps)                       # EUP slot
        scale = inv * gamma                                  # (Cout, 1)
        shift = beta - mean * scale                          # (Cout, 1)
        # act = Identity (module default act=None)
        o_ref[i] = (y * scale + shift).astype(o_ref.dtype)

    if B <= 8:
        # Short, bounded static unroll; slice offsets are compile-time ints.
        for i in range(B):
            normalize_one(i, i * P_pad)
    else:
        # Bounded live ranges for large blocks (avoid spill-bound unroll).
        def body(i, carry):
            normalize_one(i, pl.multiple_of(i * P_pad, 128))
            return carry
        jax.lax.fori_loop(0, B, body, 0)


# ----------------------------------------------------------------------------
# Generation-aware sizing helpers
# ----------------------------------------------------------------------------
def _vmem_capacity_bytes():
    try:
        return int(pltpu.get_tpu_info().vmem_capacity_bytes)
    except Exception:
        return 64 << 20  # conservative fallback (v7x per-core VMEM)


def _tensorcores_per_chip():
    """Best effort: only used to decide whether >=2 grid steps are worth it."""
    try:
        kind = jax.devices()[0].device_kind.lower()
    except Exception:
        return 1
    for tag in ("v7", "7x", "v4"):
        if tag in kind:
            return 2
    return 1


def _pick_samples_per_block(N, KD1, P_pad, Cout, in_isz, out_isz,
                            vmem_budget, min_grid_steps):
    """Largest divisor B of N that fits the VMEM budget (double-buffered
    input/output blocks + f32 scratch) and keeps >= min_grid_steps steps."""
    per_sample = (2 * KD1 * P_pad * in_isz          # input block, double-buffered
                  + 2 * Cout * P_pad * out_isz      # output block, double-buffered
                  + Cout * P_pad * 4)               # f32 matmul scratch
    fixed = 2 * Cout * KD1 * in_isz + 2 * Cout * 2 * 4
    max_b = max(1, (vmem_budget - fixed) // max(per_sample, 1))
    best = 1
    for b in range(1, N + 1):
        if b > max_b:
            break
        if N % b:
            continue
        if N // b < min_grid_steps:
            continue
        best = b
    return best


# ----------------------------------------------------------------------------
# Wrapper
# ----------------------------------------------------------------------------
def conv_act_norm(x, w, b, gamma, beta, *, stride=1, padding=0, eps=1e-5,
                  compute_dtype=jnp.bfloat16, out_dtype=jnp.float32,
                  samples_per_block=None):
    """x: [N, Cin, H, W] (NCHW, matching PyTorch). Returns [N, Cout, Ho, Wo]."""
    N, Cin, H, W = x.shape
    Cout, Cin_w, Kh, Kw = w.shape
    assert Cin_w == Cin, "groups != 1 not supported"
    Ho = (H + 2 * padding - Kh) // stride + 1
    Wo = (W + 2 * padding - Kw) // stride + 1
    P = Ho * Wo
    P_pad = ((P + 127) // 128) * 128          # lane-dense per-sample tiles
    KD = Cin * Kh * Kw
    KD1 = KD + 1                              # + ones row carrying the conv bias

    # --- glue: im2col in plain JAX (cast FIRST so the whole pass is bf16) ---
    xl = x.astype(compute_dtype)
    xp = jnp.pad(xl, ((0, 0), (0, 0), (padding, padding), (padding, padding)))
    cols = []
    for kh in range(Kh):
        for kw in range(Kw):
            cols.append(xp[:, :, kh:kh + stride * Ho:stride,
                               kw:kw + stride * Wo:stride])
    # (KK, N, Cin, Ho, Wo) -> (Cin, KK, N, Ho*Wo): KD ordering (ci-major, kh, kw)
    # matches torch's w.reshape(Cout, Cin*Kh*Kw).
    patches = jnp.stack(cols, axis=0).transpose(2, 0, 1, 3, 4).reshape(KD, N, P)
    ones = jnp.ones((1, N, P), dtype=compute_dtype)           # carries the bias
    patches = jnp.concatenate([patches, ones], axis=0)        # (KD1, N, P)
    if P_pad != P:
        patches = jnp.pad(patches, ((0, 0), (0, 0), (0, P_pad - P)))
    patches = patches.reshape(KD1, N * P_pad)                 # lane-concatenated

    w_aug = jnp.concatenate(
        [w.reshape(Cout, KD).astype(compute_dtype),
         b.reshape(Cout, 1).astype(compute_dtype)], axis=1)   # (Cout, KD1)
    gb = jnp.stack([gamma.astype(jnp.float32),
                    beta.astype(jnp.float32)], axis=1)        # (Cout, 2)

    # --- generation-aware block sizing ---
    in_isz = jnp.dtype(compute_dtype).itemsize
    out_isz = jnp.dtype(out_dtype).itemsize
    vmem_cap = _vmem_capacity_bytes()
    min_steps = 2 if (_tensorcores_per_chip() >= 2 and N >= 2) else 1
    if samples_per_block is None:
        B = _pick_samples_per_block(N, KD1, P_pad, Cout, in_isz, out_isz,
                                    int(vmem_cap * 0.45), min_steps)
    else:
        # Fall back to the largest divisor of N <= requested value.
        req = max(1, min(int(samples_per_block), N))
        B = max(d for d in range(1, req + 1) if N % d == 0)

    needed = (2 * KD1 * B * P_pad * in_isz + 2 * B * Cout * P_pad * out_isz
              + Cout * B * P_pad * 4 + 2 * Cout * KD1 * in_isz + 2 * Cout * 2 * 4)
    vmem_limit = int(min(vmem_cap * 0.98, max(2 * needed + (1 << 20), 16 << 20)))

    kernel = functools.partial(_conv_gn_kernel, eps=float(eps), B=B,
                               P_pad=P_pad, P_valid=P, Cout=Cout)
    out = pl.pallas_call(
        kernel,
        out_shape=jax.ShapeDtypeStruct((N, Cout, P_pad), out_dtype),
        grid_spec=pltpu.PrefetchScalarGridSpec(
            num_scalar_prefetch=0,
            grid=(N // B,),
            in_specs=[
                pl.BlockSpec((KD1, B * P_pad), lambda n: (0, n)),
                pl.BlockSpec((Cout, KD1), lambda n: (0, 0)),
                pl.BlockSpec((Cout, 2), lambda n: (0, 0)),
            ],
            out_specs=pl.BlockSpec((B, Cout, P_pad), lambda n: (n, 0, 0)),
            scratch_shapes=[pltpu.VMEM((Cout, B * P_pad), jnp.float32)],
        ),
        compiler_params=pltpu.CompilerParams(
            dimension_semantics=("parallel",),
            vmem_limit_bytes=vmem_limit),
    )(patches, w_aug, gb)

    if P_pad != P:
        out = out[:, :, :P]
    # (N, Cout, P) is already channel-major: reshape only, no transpose.
    return out.reshape(N, Cout, Ho, Wo)


# ----------------------------------------------------------------------------
# Reference & self-test
# ----------------------------------------------------------------------------
def _reference(x, w, b, gamma, beta, *, stride=1, padding=1, eps=1e-5):
    y = jax.lax.conv_general_dilated(
        x, w, window_strides=(stride, stride),
        padding=((padding, padding), (padding, padding)),
        dimension_numbers=("NCHW", "OIHW", "NCHW"))
    y = y + b.reshape(1, -1, 1, 1)
    mean = jnp.mean(y, axis=(1, 2, 3), keepdims=True)
    var = jnp.mean((y - mean) ** 2, axis=(1, 2, 3), keepdims=True)
    yn = (y - mean) * jax.lax.rsqrt(var + eps)
    return yn * gamma.reshape(1, -1, 1, 1) + beta.reshape(1, -1, 1, 1)


if __name__ == "__main__":
    # ConvActNorm(in_channels=4, out_channels=8, kernel_size=3, padding=1, act=None)
    N, Cin, Cout, K = 2, 4, 8, 3
    key = jax.random.PRNGKey(0)
    kx, kw, kb, kg, kbe = jax.random.split(key, 5)
    w = jax.random.normal(kw, (Cout, Cin, K, K), dtype=jnp.float32) * 0.1
    b = jax.random.normal(kb, (Cout,), dtype=jnp.float32) * 0.1
    gamma = 1.0 + 0.1 * jax.random.normal(kg, (Cout,), dtype=jnp.float32)
    beta = 0.1 * jax.random.normal(kbe, (Cout,), dtype=jnp.float32)

    # --- case 1: 16x16 (P = 256, already lane-aligned) ---
    x = jax.random.normal(kx, (N, Cin, 16, 16), dtype=jnp.float32)
    ref = _reference(x, w, b, gamma, beta, stride=1, padding=1)

    out_f32 = conv_act_norm(x, w, b, gamma, beta, stride=1, padding=1,
                            compute_dtype=jnp.float32)
    out_f32 = jax.block_until_ready(out_f32)
    assert out_f32.shape == (N, Cout, 16, 16)
    assert jnp.allclose(out_f32, ref, atol=1e-4, rtol=1e-4)

    out_bf16 = conv_act_norm(x, w, b, gamma, beta, stride=1, padding=1)
    out_bf16 = jax.block_until_ready(out_bf16)
    assert out_bf16.shape == (N, Cout, 16, 16)
    assert jnp.allclose(out_bf16, ref, atol=5e-2, rtol=5e-2)  # bf16 rounding

    # --- case 2: 14x14 (P = 196 -> padded to 256; exercises masked GN stats) ---
    x2 = jax.random.normal(kx, (N, Cin, 14, 14), dtype=jnp.float32)
    ref2 = _reference(x2, w, b, gamma, beta, stride=1, padding=1)
    out2 = conv_act_norm(x2, w, b, gamma, beta, stride=1, padding=1,
                         compute_dtype=jnp.float32)
    out2 = jax.block_until_ready(out2)
    assert out2.shape == (N, Cout, 14, 14)
    assert jnp.allclose(out2, ref2, atol=1e-4, rtol=1e-4)

    print("KERNEL_OK")
</pallas_src>

<mosaic_0001>
module attributes {stable_mosaic.version = 11 : i64} {
  func.func @_conv_gn_kernel(%arg0: i32, %arg1: memref<37x512xf32, #tpu.memory_space<vmem>>, %arg2: memref<8x37xf32, #tpu.memory_space<vmem>>, %arg3: memref<8x2xf32, #tpu.memory_space<vmem>>, %arg4: memref<2x8x256xf32, #tpu.memory_space<vmem>>, %arg5: memref<8x512xf32, #tpu.memory_space<vmem>>) attributes {dimension_semantics = [#tpu.dimension_semantics<parallel>], iteration_bounds = array<i64: 1>, scalar_prefetch = 0 : i64, scratch_operands = 1 : i64, tpu.core_type = #tpu.core_type<tc>, window_params = [{transform_indices = @transform_0, window_bounds = array<i64: 37, 512>}, {pipeline_mode = #tpu.pipeline_mode<synchronous>, transform_indices = @transform_1, window_bounds = array<i64: 8, 37>}, {pipeline_mode = #tpu.pipeline_mode<synchronous>, transform_indices = @transform_2, window_bounds = array<i64: 8, 2>}, {transform_indices = @transform_3, window_bounds = array<i64: 2, 8, 256>}]} {
    %c0 = arith.constant 0 : index
    %c0_0 = arith.constant 0 : index
    %0 = vector.load %arg2[%c0, %c0_0] : memref<8x37xf32, #tpu.memory_space<vmem>>, vector<8x37xf32>
    %c0_1 = arith.constant 0 : index
    %c0_2 = arith.constant 0 : index
    %1 = vector.load %arg1[%c0_1, %c0_2] : memref<37x512xf32, #tpu.memory_space<vmem>>, vector<37x512xf32>
    %cst = arith.constant dense<0.000000e+00> : vector<8x512xf32>
    %2 = tpu.matmul %0, %1, %cst {dimension_numbers = #tpu.dot_dimension_numbers<[1], [0], [0], [1], [0, 0, 1, 1], [], []>} : vector<8x37xf32>, vector<37x512xf32>, vector<8x512xf32> -> vector<8x512xf32>
    %c0_3 = arith.constant 0 : index
    %c0_4 = arith.constant 0 : index
    %3 = vector.load %arg5[%c0_3, %c0_4] : memref<8x512xf32, #tpu.memory_space<vmem>>, vector<8x512xf32>
    tpu.vector_store %arg5[%c0_3, %c0_4], %2 {strides = array<i32>} : memref<8x512xf32, #tpu.memory_space<vmem>>, vector<8x512xf32>,
    %c0_5 = arith.constant 0 : index
    %c0_6 = arith.constant 0 : index
    %4 = vector.load %arg3[%c0_5, %c0_6] : memref<8x2xf32, #tpu.memory_space<vmem>>, vector<8x1xf32>
    %c0_7 = arith.constant 0 : index
    %c1 = arith.constant 1 : index
    %5 = vector.load %arg3[%c0_7, %c1] : memref<8x2xf32, #tpu.memory_space<vmem>>, vector<8x1xf32>
    %c0_8 = arith.constant 0 : index
    %c0_9 = arith.constant 0 : index
    %6 = vector.load %arg5[%c0_8, %c0_9] : memref<8x512xf32, #tpu.memory_space<vmem>>, vector<8x256xf32>
    %7 = vector.shape_cast %6 : vector<8x256xf32> to vector<1x8x256xf32>
    %cst_10 = arith.constant dense<0.000000e+00> : vector<1xf32>
    %8 = vector.multi_reduction <add>, %7, %cst_10 [1, 2] : vector<1x8x256xf32> to vector<1xf32>
    %9 = vector.shape_cast %8 : vector<1xf32> to vector<1x1x1xf32>
    %10 = vector.extract %9[0, 0, 0] : f32 from vector<1x1x1xf32>
    %cst_11 = arith.constant 4.8828125E-4 : f32
    %11 = arith.mulf %10, %cst_11 : f32
    %12 = vector.broadcast %11 : f32 to vector<8x256xf32>
    %13 = arith.subf %6, %12 : vector<8x256xf32>
    %14 = arith.mulf %13, %13 : vector<8x256xf32>
    %15 = vector.shape_cast %14 : vector<8x256xf32> to vector<1x8x256xf32>
    %cst_12 = arith.constant dense<0.000000e+00> : vector<1xf32>
    %16 = vector.multi_reduction <add>, %15, %cst_12 [1, 2] : vector<1x8x256xf32> to vector<1xf32>
    %17 = vector.shape_cast %16 : vector<1xf32> to vector<1x1x1xf32>
    %18 = vector.extract %17[0, 0, 0] : f32 from vector<1x1x1xf32>
    %cst_13 = arith.constant 4.8828125E-4 : f32
    %19 = arith.mulf %18, %cst_13 : f32
    %cst_14 = arith.constant 9.99999974E-6 : f32
    %20 = arith.addf %19, %cst_14 : f32
    %21 = math.rsqrt %20 : f32
    %22 = vector.broadcast %21 : f32 to vector<8x1xf32>
    %23 = arith.mulf %22, %4 : vector<8x1xf32>
    %24 = vector.broadcast %11 : f32 to vector<8x1xf32>
    %25 = arith.mulf %24, %23 : vector<8x1xf32>
    %26 = arith.subf %5, %25 : vector<8x1xf32>
    %27 = vector.broadcast %23 : vector<8x1xf32> to vector<8x256xf32>
    %28 = arith.mulf %6, %27 : vector<8x256xf32>
    %29 = vector.broadcast %26 : vector<8x1xf32> to vector<8x256xf32>
    %30 = arith.addf %28, %29 : vector<8x256xf32>
    %c0_15 = arith.constant 0 : index
    %c0_16 = arith.constant 0 : index
    %c0_17 = arith.constant 0 : index
    %31 = vector.load %arg4[%c0_15, %c0_16, %c0_17] : memref<2x8x256xf32, #tpu.memory_space<vmem>>, vector<1x8x256xf32>
    %32 = vector.shape_cast %31 : vector<1x8x256xf32> to vector<8x256xf32>
    %33 = vector.shape_cast %30 : vector<8x256xf32> to vector<1x8x256xf32>
    tpu.vector_store %arg4[%c0_15, %c0_16, %c0_17], %33 {strides = array<i32>} : memref<2x8x256xf32, #tpu.memory_space<vmem>>, vector<1x8x256xf32>,
    %c0_18 = arith.constant 0 : index
    %c256 = arith.constant 256 : index
    %34 = vector.load %arg5[%c0_18, %c256] : memref<8x512xf32, #tpu.memory_space<vmem>>, vector<8x256xf32>
    %35 = vector.shape_cast %34 : vector<8x256xf32> to vector<1x8x256xf32>
    %cst_19 = arith.constant dense<0.000000e+00> : vector<1xf32>
    %36 = vector.multi_reduction <add>, %35, %cst_19 [1, 2] : vector<1x8x256xf32> to vector<1xf32>
    %37 = vector.shape_cast %36 : vector<1xf32> to vector<1x1x1xf32>
    %38 = vector.extract %37[0, 0, 0] : f32 from vector<1x1x1xf32>
    %cst_20 = arith.constant 4.8828125E-4 : f32
    %39 = arith.mulf %38, %cst_20 : f32
    %40 = vector.broadcast %39 : f32 to vector<8x256xf32>
    %41 = arith.subf %34, %40 : vector<8x256xf32>
    %42 = arith.mulf %41, %41 : vector<8x256xf32>
    %43 = vector.shape_cast %42 : vector<8x256xf32> to vector<1x8x256xf32>
    %cst_21 = arith.constant dense<0.000000e+00> : vector<1xf32>
    %44 = vector.multi_reduction <add>, %43, %cst_21 [1, 2] : vector<1x8x256xf32> to vector<1xf32>
    %45 = vector.shape_cast %44 : vector<1xf32> to vector<1x1x1xf32>
    %46 = vector.extract %45[0, 0, 0] : f32 from vector<1x1x1xf32>
    %cst_22 = arith.constant 4.8828125E-4 : f32
    %47 = arith.mulf %46, %cst_22 : f32
    %cst_23 = arith.constant 9.99999974E-6 : f32
    %48 = arith.addf %47, %cst_23 : f32
    %49 = math.rsqrt %48 : f32
    %50 = vector.broadcast %49 : f32 to vector<8x1xf32>
    %51 = arith.mulf %50, %4 : vector<8x1xf32>
    %52 = vector.broadcast %39 : f32 to vector<8x1xf32>
    %53 = arith.mulf %52, %51 : vector<8x1xf32>
    %54 = arith.subf %5, %53 : vector<8x1xf32>
    %55 = vector.broadcast %51 : vector<8x1xf32> to vector<8x256xf32>
    %56 = arith.mulf %34, %55 : vector<8x256xf32>
    %57 = vector.broadcast %54 : vector<8x1xf32> to vector<8x256xf32>
    %58 = arith.addf %56, %57 : vector<8x256xf32>
    %c1_24 = arith.constant 1 : index
    %c0_25 = arith.constant 0 : index
    %c0_26 = arith.constant 0 : index
    %59 = vector.load %arg4[%c1_24, %c0_25, %c0_26] : memref<2x8x256xf32, #tpu.memory_space<vmem>>, vector<1x8x256xf32>
    %60 = vector.shape_cast %59 : vector<1x8x256xf32> to vector<8x256xf32>
    %61 = vector.shape_cast %58 : vector<8x256xf32> to vector<1x8x256xf32>
    tpu.vector_store %arg4[%c1_24, %c0_25, %c0_26], %61 {strides = array<i32>} : memref<2x8x256xf32, #tpu.memory_space<vmem>>, vector<1x8x256xf32>,
    return
  }
  func.func @transform_0(%arg0: i32) -> (i32, i32) {
    %c0_i32 = arith.constant 0 : i32
    %c0_i32_0 = arith.constant 0 : i32
    return %c0_i32, %arg0 : i32, i32
  }
  func.func @transform_1(%arg0: i32) -> (i32, i32) {
    %c0_i32 = arith.constant 0 : i32
    %c0_i32_0 = arith.constant 0 : i32
    %c0_i32_1 = arith.constant 0 : i32
    return %c0_i32, %c0_i32_0 : i32, i32
  }
  func.func @transform_2(%arg0: i32) -> (i32, i32) {
    %c0_i32 = arith.constant 0 : i32
    %c0_i32_0 = arith.constant 0 : i32
    %c0_i32_1 = arith.constant 0 : i32
    return %c0_i32, %c0_i32_0 : i32, i32
  }
  func.func @transform_3(%arg0: i32) -> (i32, i32, i32) {
    %c0_i32 = arith.constant 0 : i32
    %c0_i32_0 = arith.constant 0 : i32
    %c0_i32_1 = arith.constant 0 : i32
    return %arg0, %c0_i32, %c0_i32_0 : i32, i32, i32
  }
}

</mosaic_0001>

<llo_original>
// kernel: tpu_custom_call.1
$region0: #{tpu_custom_call.1}
  #allocation0 [shape = 'u32[]', space=smem, size = 0x4, offset = 0x4, fixed_abs, tag = 'smem constant byte address 0x4 - core index']
  #allocation1 [shape = 'u32[144,128]{1,0:T(1,128)}', space=vmem, size = 0x12000, scoped, tag = 'internal scratch']
  #allocation2 [shape = 'f32[8,512]{1,0:T(8,128)}', space=vmem, size = 0x4000, scoped, tag = 'scratch operand']
  %s0 = inlined_call_operand.hbm [shape: f32[37,512], index: 0, kind: input, shape index: {}]
  %s1 = inlined_call_operand.vmem [shape: f32[8,37], index: 1, kind: input, shape index: {}]
  %s2 = inlined_call_operand.vmem [shape: f32[8,2], index: 2, kind: input, shape index: {}]
  %s3 = inlined_call_operand.hbm [shape: f32[2,8,256], index: 3, kind: output, shape index: {}]
  %s4 = sld [smem:[#allocation0]]
  $region26: #{tpu_custom_call.1} parent=0
    _
  %s6 = ssub.s32 1, %s4
  %s7 = scalar_select 0, %s6, %s4
  $region1: #{tpu_custom_call.1} parent=0
    #allocation3 [shape = 'u8[81920]{0}', space=vmem, size = 0x14000, scoped, tag = 'input window, operand 0, single buffered']
    #allocation4 [shape = 's32[1]{0}', space=sflag, size = 0x4, scoped, tag = 'scoped memory for tpu_custom_call.1']
    #allocation5 [shape = 's32[1]{0}', space=sflag, size = 0x4, scoped, tag = 'scoped memory for tpu_custom_call.1']
    #allocation6 [shape = 'u8[16384]{0}', space=vmem, size = 0x4000, scoped, tag = 'output window, operand 0, single buffered']
    %8 = vsyncpa [#allocation4], 0
    %9 = vsyncpa [#allocation5], 0
    // Predicated region
    $region2: #{tpu_custom_call.1} parent=1 // pred_check
      _
    $region3: #{tpu_custom_call.1} parent=1 // pred_check_branch
      %11 = sbr.rel (0) target = $region5
    $region4: #{tpu_custom_call.1} parent=1 // pred_region
      %s13 = ssub.s32 2560, 2560
      %14 = vsyncadd [#allocation4], %s13
      %s15 = sshll.u32 [#allocation3], 4
      %s16 = int_to_ptr.vmem [resolvable:$true] %s15
      %21 = dma.hbm_to_vmem [thread:$0]  %s0, 2560, %s16, [#allocation4], 512, 512, 32
    $region5: #{tpu_custom_call.1} parent=1 // pred_fallthru
      _
    // Predicated region
    $region6: #{tpu_custom_call.1} parent=1 // pred_check
      _
    $region7: #{tpu_custom_call.1} parent=1 // pred_check_branch
      %23 = sbr.rel (0) target = $region9
    $region8: #{tpu_custom_call.1} parent=1 // pred_region
      _
    $region9: #{tpu_custom_call.1} parent=1 // pred_fallthru
      _
    // Predicated region
    $region10: #{tpu_custom_call.1} parent=1 // pred_check
      _
    $region11: #{tpu_custom_call.1} parent=1 // pred_check_branch
      %25 = sbr.rel (0) target = $region13
    $region12: #{tpu_custom_call.1} parent=1 // pred_region
      _
    $region13: #{tpu_custom_call.1} parent=1 // pred_fallthru
      _
    // Predicated region
    $region14: #{tpu_custom_call.1} parent=1 // pred_check
      _
    $region15: #{tpu_custom_call.1} parent=1 // pred_check_branch
      %27 = sbr.rel (0) target = $region17
    $region16: #{tpu_custom_call.1} parent=1 // pred_region
      %28 = dma.done [#allocation4], 2560
    $region17: #{tpu_custom_call.1} parent=1 // pred_fallthru
      _
    %v29 = vld [vmem:[%s1] sm:$0xff]
    %v30 = vld [vmem:[#allocation3] sm:$0xff]
    %v31 = vld [vmem:[#allocation3 + $0x8] sm:$0xff]
    %v32 = vld [vmem:[#allocation3 + $0x10] sm:$0xff]
    %v33 = vld [vmem:[#allocation3 + $0x18] sm:$0xff]
    %v34 = vld [vmem:[#allocation3 + $0x20] sm:$0xff]
    %v35 = vld [vmem:[#allocation3 + $0x28] sm:$0xff]
    %v36 = vld [vmem:[#allocation3 + $0x30] sm:$0xff]
    %v37 = vld [vmem:[#allocation3 + $0x38] sm:$0xff]
    %v38 = vld [vmem:[#allocation3 + $0x40] sm:$0xff]
    %v39 = vld [vmem:[#allocation3 + $0x48] sm:$0xff]
    %v40 = vld [vmem:[#allocation3 + $0x50] sm:$0xff]
    %v41 = vld [vmem:[#allocation3 + $0x58] sm:$0xff]
    %v42 = vld [vmem:[#allocation3 + $0x60] sm:$0xff]
    %v43 = vld [vmem:[#allocation3 + $0x68] sm:$0xff]
    %v44 = vld [vmem:[#allocation3 + $0x70] sm:$0xff]
    %v45 = vld [vmem:[#allocation3 + $0x78] sm:$0xff]
    %v46 = vld [vmem:[#allocation3 + $0x80] sm:$0x1f]
    %v47 = vld [vmem:[#allocation3 + $0x88] sm:$0x1f]
    %v48 = vld [vmem:[#allocation3 + $0x90] sm:$0x1f]
    %v49 = vld [vmem:[#allocation3 + $0x98] sm:$0x1f]
    %vm50 = vcmask 302080
    %v52 = vsel %vm50, %v29, 0
    %vm54 = vcmask 1044480
    %v56 = vsel %vm54, %v46, 0
    %v59 = vsel %vm54, %v47, 0
    %v62 = vsel %vm54, %v48, 0
    %v65 = vsel %vm54, %v49, 0
    %67 = vmatprep.subr.mxu0 %v31
    %68 = vmatpush1.msra.mxu0 %v30
    %69 = vmatprep.subr.mxu0 %v35
    %70 = vmatpush1.msra.mxu0 %v34
    %71 = vmatprep.subr.mxu0 %v39
    %72 = vmatpush1.msra.mxu0 %v38
    %73 = vmatprep.subr.mxu0 %v43
    %74 = vmatpush1.msra.mxu0 %v42
    %75 = vmatprep.subr.mxu0 %v59
    %76 = vmatpush1.msra.mxu0 %v56
    %77 = vmatprep.subr.mxu0 0.0
    %78 = vmatpush1.msra.mxu0 0.0
    %79 = vmatprep.subr.mxu0 0.0
    %80 = vmatpush1.msra.mxu0 0.0
    %81 = vmatprep.subr.mxu0 0.0
    %82 = vmatpush1.msra.mxu0 0.0
    %83 = vmatprep.subr.mxu0 0.0
    %84 = vmatpush1.msra.mxu0 0.0
    %85 = vmatprep.subr.mxu0 0.0
    %86 = vmatpush1.msra.mxu0 0.0
    %87 = vmatprep.subr.mxu0 0.0
    %88 = vmatpush1.msra.mxu0 0.0
    %89 = vmatprep.subr.mxu0 0.0
    %90 = vmatpush1.msra.mxu0 0.0
    %91 = vmatprep.subr.mxu0 0.0
    %92 = vmatpush1.msra.mxu0 0.0
    %93 = vmatprep.subr.mxu0 0.0
    %94 = vmatpush1.msra.mxu0 0.0
    %95 = vmatprep.subr.mxu0 0.0
    %96 = vmatpush1.msra.mxu0 0.0
    %97 = vmatprep.subr.mxu0 0.0
    %98 = vmatpush1.msra.mxu0 0.0
    %99 = vmatprep.subr.mxu0 0.0
    %100 = vmatpush1.msra.mxu0 0.0
    %101 = vmatprep.subr.mxu0 0.0
    %102 = vmatpush1.msra.mxu0 0.0
    %103 = vmatprep.subr.mxu0 0.0
    %104 = vmatpush1.msra.mxu0 0.0
    %105 = vmatprep.subr.mxu0 0.0
    %106 = vmatpush1.msra.mxu0 0.0
    %107 = vmatprep.subr.mxu0 0.0
    %108 = vmatpush1.msra.mxu0 0.0
    %109 = vmatprep.subr.mxu0 0.0
    %110 = vmatpush1.msra.mxu0 0.0
    %111 = vmatprep.subr.mxu0 0.0
    %112 = vmatpush1.msra.mxu0 0.0
    %113 = vmatprep.subr.mxu0 0.0
    %114 = vmatpush1.msra.mxu0 0.0
    %115 = vmatprep.subr.mxu0 0.0
    %116 = vmatpush1.msra.mxu0 0.0
    %117 = vmatprep.subr.mxu0 0.0
    %118 = vmatpush1.msra.mxu0 0.0
    %119 = vmatprep.subr.mxu0 0.0
    %120 = vmatpush1.msra.mxu0 0.0
    %121 = vmatprep.subr.mxu0 0.0
    %122 = vmatpush1.msra.mxu0 0.0
    %123 = vmatprep.subr.mxu0 0.0
    %124 = vmatpush1.msra.mxu0 0.0
    %125 = vmatprep.subr.mxu0 0.0
    %126 = vmatpush1.msra.mxu0 0.0
    %127 = vmatprep.subr.mxu0 0.0
    %128 = vmatpush1.msra.mxu0 0.0
    %129 = vmatprep.subr.mxu0 0.0
    %130 = vmatpush1.msra.mxu0 0.0
    %131 = vmatprep.mubr.f32.mxu0 0.0
    %132 = vmatmul.mubr.f32.gmra.mrb[0].mxu0 %v52
    %v133 = vpop.f32.mrb[0].mxu0
    %v134 = vadd.f32 0.0, %v133
    %v135 = vpop.f32.mrb[0].mxu0
    %v136 = vadd.f32 0.0, %v135
    %137 = vdwg.mxu0
    %138 = vmatprep.subr.mxu0 %v33
    %139 = vmatpush1.msra.mxu0 %v32
    %140 = vmatprep.subr.mxu0 %v37
    %141 = vmatpush1.msra.mxu0 %v36
    %142 = vmatprep.subr.mxu0 %v41
    %143 = vmatpush1.msra.mxu0 %v40
    %144 = vmatprep.subr.mxu0 %v45
    %145 = vmatpush1.msra.mxu0 %v44
    %146 = vmatprep.subr.mxu0 %v65
    %147 = vmatpush1.msra.mxu0 %v62
    %148 = vmatprep.subr.mxu0 0.0
    %149 = vmatpush1.msra.mxu0 0.0
    %150 = vmatprep.subr.mxu0 0.0
    %151 = vmatpush1.msra.mxu0 0.0
    %152 = vmatprep.subr.mxu0 0.0
    %153 = vmatpush1.msra.mxu0 0.0
    %154 = vmatprep.subr.mxu0 0.0
    %155 = vmatpush1.msra.mxu0 0.0
    %156 = vmatprep.subr.mxu0 0.0
    %157 = vmatpush1.msra.mxu0 0.0
    %158 = vmatprep.subr.mxu0 0.0
    %159 = vmatpush1.msra.mxu0 0.0
    %160 = vmatprep.subr.mxu0 0.0
    %161 = vmatpush1.msra.mxu0 0.0
    %162 = vmatprep.subr.mxu0 0.0
    %163 = vmatpush1.msra.mxu0 0.0
    %164 = vmatprep.subr.mxu0 0.0
    %165 = vmatpush1.msra.mxu0 0.0
    %166 = vmatprep.subr.mxu0 0.0
    %167 = vmatpush1.msra.mxu0 0.0
    %168 = vmatprep.subr.mxu0 0.0
    %169 = vmatpush1.msra.mxu0 0.0
    %170 = vmatprep.subr.mxu0 0.0
    %171 = vmatpush1.msra.mxu0 0.0
    %172 = vmatprep.subr.mxu0 0.0
    %173 = vmatpush1.msra.mxu0 0.0
    %174 = vmatprep.subr.mxu0 0.0
    %175 = vmatpush1.msra.mxu0 0.0
    %176 = vmatprep.subr.mxu0 0.0
    %177 = vmatpush1.msra.mxu0 0.0
    %178 = vmatprep.subr.mxu0 0.0
    %179 = vmatpush1.msra.mxu0 0.0
    %180 = vmatprep.subr.mxu0 0.0
    %181 = vmatpush1.msra.mxu0 0.0
    %182 = vmatprep.subr.mxu0 0.0
    %183 = vmatpush1.msra.mxu0 0.0
    %184 = vmatprep.subr.mxu0 0.0
    %185 = vmatpush1.msra.mxu0 0.0
    %186 = vmatprep.subr.mxu0 0.0
    %187 = vmatpush1.msra.mxu0 0.0
    %188 = vmatprep.subr.mxu0 0.0
    %189 = vmatpush1.msra.mxu0 0.0
    %190 = vmatprep.subr.mxu0 0.0
    %191 = vmatpush1.msra.mxu0 0.0
    %192 = vmatprep.subr.mxu0 0.0
    %193 = vmatpush1.msra.mxu0 0.0
    %194 = vmatprep.subr.mxu0 0.0
    %195 = vmatpush1.msra.mxu0 0.0
    %196 = vmatprep.subr.mxu0 0.0
    %197 = vmatpush1.msra.mxu0 0.0
    %198 = vmatprep.subr.mxu0 0.0
    %199 = vmatpush1.msra.mxu0 0.0
    %200 = vmatprep.subr.mxu0 0.0
    %201 = vmatpush1.msra.mxu0 0.0
    %202 = vmatprep.mubr.f32.mxu0 0.0
    %203 = vmatmul.mubr.f32.gmra.mrb[0].mxu0 %v52
    %v204 = vpop.f32.mrb[0].mxu0
    %v205 = vadd.f32 0.0, %v204
    %v206 = vpop.f32.mrb[0].mxu0
    %v207 = vadd.f32 0.0, %v206
    %208 = vdwg.mxu0
    %209 = vst [vmem:[#allocation2] sm:$0xff] %v134
    %210 = vst [vmem:[#allocation2 + $0x8] sm:$0xff] %v136
    %211 = vst [vmem:[#allocation2 + $0x10] sm:$0xff] %v205
    %212 = vst [vmem:[#allocation2 + $0x18] sm:$0xff] %v207
    %v213 = vld [vmem:[%s2] sm:$0xff]
    %v214 = vld [vmem:[#allocation2] sm:$0xff]
    %v215 = vld [vmem:[#allocation2 + $0x8] sm:$0xff]
    %v216 = vadd.f32 %v214, %v215
    %217 = vadd.xlane.f32.xlu0 %v216
    %v218 = vpop.xlane.xlu0 %217
    %v219 = vrot.slane %v218, 4
    %v220 = vadd.f32 %v218, %v219
    %v221 = vrot.slane %v220, 2
    %v222 = vadd.f32 %v220, %v221
    %v223 = vrot.slane %v222, 1
    %v224 = vadd.f32 %v222, %v223
    %s225 = vtos %v224
    %s226 = smul.f32 %s225, 0.00048828125
    %v227 = vstv %s226
    %v228 = vsub.f32 %v214, %v227
    %v229 = vsub.f32 %v215, %v227
    %v230 = vmul.f32 %v228, %v228
    %v231 = vmul.f32 %v229, %v229
    %v232 = vadd.f32 %v230, %v231
    %233 = vadd.xlane.f32.xlu0 %v232
    %v234 = vpop.xlane.xlu0 %233
    %v235 = vrot.slane %v234, 4
    %v236 = vadd.f32 %v234, %v235
    %v237 = vrot.slane %v236, 2
    %v238 = vadd.f32 %v236, %v237
    %v239 = vrot.slane %v238, 1
    %v240 = vadd.f32 %v238, %v239
    %s241 = vtos %v240
    %s242 = smul.f32 %s241, 0.00048828125
    %s243 = sadd.f32 %s242, 1e-05
    %v244 = vstv %s243
    %v245 = vrsqrt.pop %v244
    %s246 = vtos %v245
    %v247 = vstv %s246
    %v248 = vmul.f32 %v247, %v213
    %v249 = vmul.f32 %v227, %v248
    %251 = vrot.lane.b32.xlu0 %v249, 1
    %v252 = vpop.permute.xlu0 %251
    %v254 = vsub.f32 %v213, %v252
    %256 = vset.pattern.permute.xlu0 0
    %257 = vperm.xlu0 %256, %v248
    %v258 = vpop.permute.xlu0 %257
    %v260 = vmul.f32 %v214, %v258
    %v261 = vmul.f32 %v215, %v258
    %263 = vset.pattern.permute.xlu0 1
    %264 = vperm.xlu0 %263, %v254
    %v265 = vpop.permute.xlu0 %264
    %v267 = vadd.f32 %v260, %v265
    %v268 = vadd.f32 %v261, %v265
    %269 = vst [vmem:[#allocation6] sm:$0xff] %v267
    %270 = vst [vmem:[#allocation6 + $0x8] sm:$0xff] %v268
    %v271 = vld [vmem:[#allocation2 + $0x10] sm:$0xff]
    %v272 = vld [vmem:[#allocation2 + $0x18] sm:$0xff]
    %v273 = vadd.f32 %v271, %v272
    %274 = vadd.xlane.f32.xlu0 %v273
    %v275 = vpop.xlane.xlu0 %274
    %v276 = vrot.slane %v275, 4
    %v277 = vadd.f32 %v275, %v276
    %v278 = vrot.slane %v277, 2
    %v279 = vadd.f32 %v277, %v278
    %v280 = vrot.slane %v279, 1
    %v281 = vadd.f32 %v279, %v280
    %s282 = vtos %v281
    %s283 = smul.f32 %s282, 0.00048828125
    %v284 = vstv %s283
    %v285 = vsub.f32 %v271, %v284
    %v286 = vsub.f32 %v272, %v284
    %v287 = vmul.f32 %v285, %v285
    %v288 = vmul.f32 %v286, %v286
    %v289 = vadd.f32 %v287, %v288
    %290 = vadd.xlane.f32.xlu0 %v289
    %v291 = vpop.xlane.xlu0 %290
    %v292 = vrot.slane %v291, 4
    %v293 = vadd.f32 %v291, %v292
    %v294 = vrot.slane %v293, 2
    %v295 = vadd.f32 %v293, %v294
    %v296 = vrot.slane %v295, 1
    %v297 = vadd.f32 %v295, %v296
    %s298 = vtos %v297
    %s299 = smul.f32 %s298, 0.00048828125
    %s300 = sadd.f32 %s299, 1e-05
    %v301 = vstv %s300
    %v302 = vrsqrt.pop %v301
    %s303 = vtos %v302
    %v304 = vstv %s303
    %v305 = vmul.f32 %v304, %v213
    %v306 = vmul.f32 %v284, %v305
    %308 = vrot.lane.b32.xlu0 %v306, 1
    %v309 = vpop.permute.xlu0 %308
    %v311 = vsub.f32 %v213, %v309
    %313 = vset.pattern.permute.xlu0 0
    %314 = vperm.xlu0 %313, %v305
    %v315 = vpop.permute.xlu0 %314
    %v317 = vmul.f32 %v271, %v315
    %v318 = vmul.f32 %v272, %v315
    %320 = vset.pattern.permute.xlu0 1
    %321 = vperm.xlu0 %320, %v311
    %v322 = vpop.permute.xlu0 %321
    %v324 = vadd.f32 %v317, %v322
    %v325 = vadd.f32 %v318, %v322
    %s326 = scalar_lea.vmem [#allocation6], 16
    %327 = vst [vmem:[%s326] sm:$0xff] %v324
    %328 = vst [vmem:[%s326 + $0x8] sm:$0xff] %v325
    // Predicated region
    $region18: #{tpu_custom_call.1} parent=1 // pred_check
      _
    $region19: #{tpu_custom_call.1} parent=1 // pred_check_branch
      %330 = sbr.rel (0) target = $region21
    $region20: #{tpu_custom_call.1} parent=1 // pred_region
      %s332 = ssub.s32 512, 512
      %333 = vsyncadd [#allocation5], %s332
      %s334 = sshll.u32 [#allocation6], 4
      %s335 = int_to_ptr.vmem [resolvable:$true] %s334
      %340 = dma.vmem_to_hbm [thread:$0]  %s335, 512, %s3, [#allocation5], 256, 256, 16
    $region21: #{tpu_custom_call.1} parent=1 // pred_fallthru
      _
    // Predicated region
    $region22: #{tpu_custom_call.1} parent=1 // pred_check
      _
    $region23: #{tpu_custom_call.1} parent=1 // pred_check_branch
      %342 = sbr.rel (0) target = $region25
    $region24: #{tpu_custom_call.1} parent=1 // pred_region
      %343 = dma.done [#allocation5], 512
    $region25: #{tpu_custom_call.1} parent=1 // pred_fallthru
      _
    %344 = vsyncpa [#allocation4], 1
    %345 = vsyncpa [#allocation5], 1

</llo_original>
